<compile_context>
chip_gen: v7x
topology: tpu7x:2x2x1
jax: 0.10.0
libtpu: 0.0.40
codegen_flags: <defaults>
</compile_context>

<pallas_src>
import numpy as np
import jax
import jax.numpy as jnp
from jax.experimental import pallas as pl
from jax.experimental.pallas import tpu as pltpu

N_QUBITS = 8
DIM = 2 ** N_QUBITS          # 256
NPAIR = N_QUBITS * N_QUBITS  # 64 pairwise products
PACK = 8                     # batch rows packed per (f32) sublane row


# ----------------------------------------------------------------------------
# Quantum-circuit glue (plain numpy, runs once at setup time, not on TPU):
# build U8 = circuit applied to basis states |0>..|7> (the only amplitudes
# populated by AmplitudeEmbedding of 8 features, pad_with=0).
# PennyLane convention: wire 0 is the most significant bit of the basis index.
# ----------------------------------------------------------------------------
def _u3(theta, phi, lam):
    c, s = np.cos(theta / 2), np.sin(theta / 2)
    return np.array(
        [[c, -np.exp(1j * lam) * s],
         [np.exp(1j * phi) * s, np.exp(1j * (phi + lam)) * c]],
        dtype=np.complex128)


def _ry(theta):
    c, s = np.cos(theta / 2), np.sin(theta / 2)
    return np.array([[c, -s], [s, c]], dtype=np.complex128)


def _rz(theta):
    return np.array([[np.exp(-1j * theta / 2), 0],
                     [0, np.exp(1j * theta / 2)]], dtype=np.complex128)


_CNOT = np.array([[1, 0, 0, 0],
                  [0, 1, 0, 0],
                  [0, 0, 0, 1],
                  [0, 0, 1, 0]], dtype=np.complex128)


def _apply_1q(state, gate, wire):
    state = np.tensordot(gate, state, axes=([1], [wire]))
    return np.moveaxis(state, 0, wire)


def _apply_2q(state, gate, wires):
    g = gate.reshape(2, 2, 2, 2)
    state = np.tensordot(g, state, axes=([2, 3], list(wires)))
    return np.moveaxis(state, [0, 1], list(wires))


def _apply_u_su4(state, w, wires):
    w0, w1, w2, w3, w4, w5, w6 = w
    state = _apply_1q(state, _u3(*w0), wires[0])
    state = _apply_1q(state, _u3(*w1), wires[1])
    state = _apply_2q(state, _CNOT, (wires[0], wires[1]))
    state = _apply_1q(state, _ry(w2), wires[0])
    state = _apply_1q(state, _rz(w3), wires[1])
    state = _apply_2q(state, _CNOT, (wires[1], wires[0]))
    state = _apply_1q(state, _ry(w4), wires[0])
    state = _apply_2q(state, _CNOT, (wires[0], wires[1]))
    state = _apply_1q(state, _u3(*w5), wires[0])
    state = _apply_1q(state, _u3(*w6), wires[1])
    return state


def build_circuit_columns(qweights):
    """U8 (complex, [256, 8]): circuit applied to basis states |0>..|7>."""
    cols = np.zeros((DIM, N_QUBITS), dtype=np.complex128)
    for j in range(N_QUBITS):
        cols[j, j] = 1.0
    state = cols.reshape((2,) * N_QUBITS + (N_QUBITS,))
    wire_pairs = [(0, 1), (2, 3), (4, 5), (6, 7), (1, 2), (3, 4), (5, 6), (7, 0)]
    for wires in wire_pairs:
        state = _apply_u_su4(state, qweights, wires)
    return state.reshape(DIM, N_QUBITS)


def build_pauliz_matrix():
    """Zmat[k, i] = +1 / -1 depending on bit of wire i (wire 0 = MSB)."""
    z = np.zeros((DIM, N_QUBITS), dtype=np.float64)
    for k in range(DIM):
        for i in range(N_QUBITS):
            bit = (k >> (N_QUBITS - 1 - i)) & 1
            z[k, i] = 1.0 - 2.0 * bit
    return z


def build_cmat(u8, zmat, w2t_np):
    """Fold circuit + PauliZ + final-FC weight into one [64, out] matrix.

    zvals[b,i] = hn^T M_i hn with M_i[j,l] = sum_k Z[k,i]*(Ur[k,j]Ur[k,l] +
    Ui[k,j]Ui[k,l]);  folding W2 gives C[j*8+l, o] = sum_i M_i[j,l]*W2t[i,o].
    """
    ur, ui = u8.real, u8.imag                                    # [256, 8]
    m = (np.einsum('ki,kj,kl->ijl', zmat, ur, ur)
         + np.einsum('ki,kj,kl->ijl', zmat, ui, ui))             # [8, 8, 8]
    q = np.einsum('ijl,io->jlo', m, np.asarray(w2t_np, np.float64))
    return q.reshape(NPAIR, -1).astype(np.float32)               # [64, out]


def build_packed_constants(w1t_np, b1_np, cmat_np, b2_np):
    """Block-diagonal 'packed' weights so the kernel keeps 8 batch rows per
    sublane row (lane-dense tiles end-to-end, no in-kernel relayouts):

      x_packed  [r, s*F  + f]        = x  [8r+s, f]
      h_packed  [r, s*8  + q]        = h  [8r+s, q]
      hh_packed [r, s*64 + j*8 + l]  = h  [8r+s, j] * h[8r+s, l]
      out_packed[r, s*O  + o]        = out[8r+s, o]
    """
    w1t_np = np.asarray(w1t_np, np.float32)
    cmat_np = np.asarray(cmat_np, np.float32)
    F = w1t_np.shape[0]
    O = cmat_np.shape[1]
    Q = N_QUBITS

    w1p = np.zeros((PACK * F, PACK * Q), np.float32)
    b1p = np.zeros((1, PACK * Q), np.float32)
    cpack = np.zeros((PACK * NPAIR, PACK * O), np.float32)
    sumexp = np.zeros((PACK * Q, PACK * O), np.float32)
    b2p = np.zeros((1, PACK * O), np.float32)
    selj = np.zeros((PACK * Q, PACK * NPAIR), np.float32)
    sell = np.zeros((PACK * Q, PACK * NPAIR), np.float32)

    b1_row = np.asarray(b1_np, np.float32).reshape(-1)
    b2_row = np.asarray(b2_np, np.float32).reshape(-1)
    for s in range(PACK):
        w1p[s * F:(s + 1) * F, s * Q:(s + 1) * Q] = w1t_np
        b1p[0, s * Q:(s + 1) * Q] = b1_row
        cpack[s * NPAIR:(s + 1) * NPAIR, s * O:(s + 1) * O] = cmat_np
        sumexp[s * Q:(s + 1) * Q, s * O:(s + 1) * O] = 1.0
        b2p[0, s * O:(s + 1) * O] = b2_row
        for j in range(Q):
            for l in range(Q):
                d = s * NPAIR + j * Q + l
                selj[s * Q + j, d] = 1.0
                sell[s * Q + l, d] = 1.0
    selcat = np.concatenate([selj, sell], axis=1)    # [PACK*8, 2*PACK*64]
    return (jnp.asarray(w1p), jnp.asarray(b1p), jnp.asarray(selcat),
            jnp.asarray(sumexp), jnp.asarray(cpack), jnp.asarray(b2p))


# ----------------------------------------------------------------------------
# Pallas kernel: packed classical layer -> collapsed quantum quadratic form.
# Every operand / intermediate is >= 128 lanes wide (lane-dense), every store
# is unmasked, and all relayout work was moved offline into the packed weights.
# ----------------------------------------------------------------------------
def hqcnn_kernel(xp_ref, w1p_ref, b1p_ref, selcat_ref, sumexp_ref, cpack_ref,
                 b2p_ref, out_ref):
    xp = xp_ref[...]                                               # [tbp, 8F]
    # classical layer 1, 8 batch rows per sublane row
    h = jnp.dot(xp, w1p_ref[...],
                preferred_element_type=jnp.float32) + b1p_ref[...]  # [tbp, 64]
    # ||h||^2 per batch row, broadcast to that row's output lanes in one matmul
    sumsq = jnp.dot(h * h, sumexp_ref[...],
                    preferred_element_type=jnp.float32)             # [tbp, 8O]
    sumsq = jnp.maximum(sumsq, 1e-30)          # guard zero-padded batch rows
    r = pl.reciprocal(sumsq, approx=True)      # EUP vrcp (free bundle slot)
    inv = r * (2.0 - sumsq * r)                # one Newton step -> f32 accuracy
    # pairwise products h_j*h_l via ONE 0/1 selector matmul, then split halves
    hcat = jnp.dot(h, selcat_ref[...],
                   preferred_element_type=jnp.float32)              # [tbp, 1024]
    half = PACK * NPAIR                                             # 512
    hh = hcat[:, :half] * hcat[:, half:]                            # [tbp, 512]
    # folded (circuit + PauliZ + final FC) quadratic form, then scale + bias
    q = jnp.dot(hh, cpack_ref[...],
                preferred_element_type=jnp.float32)                 # [tbp, 8O]
    out_ref[...] = q * inv + b2p_ref[...]


def _round_up(n, m):
    return ((n + m - 1) // m) * m


def mimo_hqcnn_forward(x, consts, *, tile_b=4096):
    """Batch-tiled, lane-dense forward.  consts from build_packed_constants."""
    w1p, b1p, selcat, sumexp, cpack, b2p = consts
    B, F = x.shape
    out_dim = cpack.shape[1] // PACK

    # batch tile: multiple of 64 rows so the packed block has >= 8 sublanes
    tb = max(64, min(tile_b, _round_up(B, 64)))
    tb = _round_up(tb, 64)
    Bp = _round_up(B, tb)
    if Bp != B:
        x = jnp.pad(x, ((0, Bp - B), (0, 0)))

    # free row-major re-view: 8 batch rows per packed row (lane-dense I/O)
    xp = x.reshape(Bp // PACK, PACK * F)
    tbp = tb // PACK

    const = lambda i: (0, 0)          # grid-invariant -> stays VMEM-resident

    cost = pl.CostEstimate(
        flops=int((Bp // PACK) * 2 * (
            (PACK * F) * (PACK * N_QUBITS)
            + (PACK * N_QUBITS) * (PACK * out_dim)
            + (PACK * N_QUBITS) * (2 * PACK * NPAIR)
            + (PACK * NPAIR) * (PACK * out_dim))),
        transcendentals=int(Bp * out_dim),
        bytes_accessed=int(4 * (Bp * F + Bp * out_dim
                                + w1p.size + b1p.size + selcat.size
                                + sumexp.size + cpack.size + b2p.size)),
    )

    outp = pl.pallas_call(
        hqcnn_kernel,
        out_shape=jax.ShapeDtypeStruct((Bp // PACK, PACK * out_dim), jnp.float32),
        grid_spec=pltpu.PrefetchScalarGridSpec(
            num_scalar_prefetch=0,
            grid=(Bp // tb,),
            in_specs=[
                pl.BlockSpec((tbp, PACK * F), lambda i: (i, 0)),   # x packed
                pl.BlockSpec(w1p.shape, const),                    # W1 packed
                pl.BlockSpec(b1p.shape, const),                    # b1 packed
                pl.BlockSpec(selcat.shape, const),                 # SELJ|SELL
                pl.BlockSpec(sumexp.shape, const),                 # sum+expand
                pl.BlockSpec(cpack.shape, const),                  # C packed
                pl.BlockSpec(b2p.shape, const),                    # b2 packed
            ],
            out_specs=pl.BlockSpec((tbp, PACK * out_dim), lambda i: (i, 0)),
        ),
        compiler_params=pltpu.CompilerParams(
            dimension_semantics=("parallel",)),  # megacore sharding on v7x
        cost_estimate=cost,
    )(xp, w1p, b1p, selcat, sumexp, cpack, b2p)

    # free row-major re-view back to [B, out_dim]
    return outp.reshape(Bp, out_dim)[:B]


# ----------------------------------------------------------------------------
# Reference: the original (uncollapsed) chain in float64 numpy.
# ----------------------------------------------------------------------------
def reference_forward_np(x, w1t, b1, u8, zmat, w2t, b2):
    x = np.asarray(x, np.float64)
    w1t = np.asarray(w1t, np.float64)
    b1 = np.asarray(b1, np.float64)
    w2t = np.asarray(w2t, np.float64)
    b2 = np.asarray(b2, np.float64)
    h = x @ w1t + b1
    hn = h / np.linalg.norm(h, axis=-1, keepdims=True)
    psi = hn @ u8.T                                  # [B, 256] complex
    probs = np.abs(psi) ** 2
    z = probs @ zmat
    return z @ w2t + b2


if __name__ == "__main__":
    # small problem sizes consistent with the module
    num_ap, num_ue, tau_p = 4, 4, 4
    in_features = num_ap * num_ue          # 16
    out_features = num_ue * tau_p          # 16
    batch = 2

    key = jax.random.PRNGKey(0)
    k_x, k_w1, k_b1, k_w2, k_b2, k_q, k_x2 = jax.random.split(key, 7)

    # deterministic synthetic parameters
    x = jax.random.normal(k_x, (batch, in_features), dtype=jnp.float32)
    w1t = 0.2 * jax.random.normal(k_w1, (in_features, N_QUBITS), dtype=jnp.float32)
    b1 = 0.1 * jax.random.normal(k_b1, (1, N_QUBITS), dtype=jnp.float32)
    w2t = 0.2 * jax.random.normal(k_w2, (N_QUBITS, out_features), dtype=jnp.float32)
    b2 = 0.1 * jax.random.normal(k_b2, (1, out_features), dtype=jnp.float32)

    # quantum-layer weights (weight_shapes: 4 x (3,) U3 params, 3 scalars)
    qflat = np.asarray(jax.random.uniform(k_q, (15,), dtype=jnp.float32,
                                          minval=0.0, maxval=2 * np.pi),
                       dtype=np.float64)
    qweights = (qflat[0:3], qflat[3:6], qflat[6], qflat[7], qflat[8],
                qflat[9:12], qflat[12:15])

    # host-side folding of the fixed quantum circuit into kernel constants
    u8 = build_circuit_columns(qweights)             # complex [256, 8]
    zmat = build_pauliz_matrix()                     # [256, 8]
    cmat = build_cmat(u8, zmat, np.asarray(w2t))     # [64, 16]
    consts = build_packed_constants(np.asarray(w1t), np.asarray(b1),
                                    cmat, np.asarray(b2))

    # check 1: tiny batch (single grid step)
    out = jax.block_until_ready(mimo_hqcnn_forward(x, consts))
    ref = reference_forward_np(x, w1t, b1, u8, zmat, w2t, b2)
    np.testing.assert_allclose(np.asarray(out), ref, rtol=2e-4, atol=2e-4)

    # check 2: non-aligned batch exercising the multi-step grid + padding path
    x2 = jax.random.normal(k_x2, (130, in_features), dtype=jnp.float32)
    out2 = jax.block_until_ready(mimo_hqcnn_forward(x2, consts, tile_b=64))
    ref2 = reference_forward_np(x2, w1t, b1, u8, zmat, w2t, b2)
    np.testing.assert_allclose(np.asarray(out2), ref2, rtol=2e-4, atol=2e-4)

    print("KERNEL_OK")
</pallas_src>

<mosaic_0001>
module attributes {stable_mosaic.version = 11 : i64} {
  func.func @hqcnn_kernel(%arg0: i32, %arg1: memref<8x128xf32, #tpu.memory_space<vmem>>, %arg2: memref<128x64xf32, #tpu.memory_space<vmem>>, %arg3: memref<1x64xf32, #tpu.memory_space<vmem>>, %arg4: memref<64x1024xf32, #tpu.memory_space<vmem>>, %arg5: memref<64x128xf32, #tpu.memory_space<vmem>>, %arg6: memref<512x128xf32, #tpu.memory_space<vmem>>, %arg7: memref<1x128xf32, #tpu.memory_space<vmem>>, %arg8: memref<8x128xf32, #tpu.memory_space<vmem>>) attributes {dimension_semantics = [#tpu.dimension_semantics<parallel>], iteration_bounds = array<i64: 1>, scalar_prefetch = 0 : i64, scratch_operands = 0 : i64, tpu.core_type = #tpu.core_type<tc>, window_params = [{transform_indices = @transform_0, window_bounds = array<i64: 8, 128>}, {pipeline_mode = #tpu.pipeline_mode<synchronous>, transform_indices = @transform_1, window_bounds = array<i64: 128, 64>}, {pipeline_mode = #tpu.pipeline_mode<synchronous>, transform_indices = @transform_2, window_bounds = array<i64: 1, 64>}, {pipeline_mode = #tpu.pipeline_mode<synchronous>, transform_indices = @transform_3, window_bounds = array<i64: 64, 1024>}, {pipeline_mode = #tpu.pipeline_mode<synchronous>, transform_indices = @transform_4, window_bounds = array<i64: 64, 128>}, {pipeline_mode = #tpu.pipeline_mode<synchronous>, transform_indices = @transform_5, window_bounds = array<i64: 512, 128>}, {pipeline_mode = #tpu.pipeline_mode<synchronous>, transform_indices = @transform_6, window_bounds = array<i64: 1, 128>}, {transform_indices = @transform_7, window_bounds = array<i64: 8, 128>}]} {
    %c0 = arith.constant 0 : index
    %c0_0 = arith.constant 0 : index
    %0 = vector.load %arg1[%c0, %c0_0] : memref<8x128xf32, #tpu.memory_space<vmem>>, vector<8x128xf32>
    %c0_1 = arith.constant 0 : index
    %c0_2 = arith.constant 0 : index
    %1 = vector.load %arg2[%c0_1, %c0_2] : memref<128x64xf32, #tpu.memory_space<vmem>>, vector<128x64xf32>
    %cst = arith.constant dense<0.000000e+00> : vector<8x64xf32>
    %2 = tpu.matmul %0, %1, %cst {dimension_numbers = #tpu.dot_dimension_numbers<[1], [0], [0], [1], [0, 0, 1, 1], [], []>} : vector<8x128xf32>, vector<128x64xf32>, vector<8x64xf32> -> vector<8x64xf32>
    %c0_3 = arith.constant 0 : index
    %c0_4 = arith.constant 0 : index
    %3 = vector.load %arg3[%c0_3, %c0_4] : memref<1x64xf32, #tpu.memory_space<vmem>>, vector<1x64xf32>
    %4 = vector.broadcast %3 : vector<1x64xf32> to vector<8x64xf32>
    %5 = arith.addf %2, %4 : vector<8x64xf32>
    %6 = arith.mulf %5, %5 : vector<8x64xf32>
    %c0_5 = arith.constant 0 : index
    %c0_6 = arith.constant 0 : index
    %7 = vector.load %arg5[%c0_5, %c0_6] : memref<64x128xf32, #tpu.memory_space<vmem>>, vector<64x128xf32>
    %cst_7 = arith.constant dense<0.000000e+00> : vector<8x128xf32>
    %8 = tpu.matmul %6, %7, %cst_7 {dimension_numbers = #tpu.dot_dimension_numbers<[1], [0], [0], [1], [0, 0, 1, 1], [], []>} : vector<8x64xf32>, vector<64x128xf32>, vector<8x128xf32> -> vector<8x128xf32>
    %cst_8 = arith.constant 1.000000e-30 : f32
    %9 = vector.broadcast %cst_8 : f32 to vector<8x128xf32>
    %10 = arith.maximumf %8, %9 : vector<8x128xf32>
    %11 = tpu.reciprocal %10 {approx = true} : vector<8x128xf32> -> vector<8x128xf32>
    %12 = arith.mulf %10, %11 : vector<8x128xf32>
    %cst_9 = arith.constant 2.000000e+00 : f32
    %13 = vector.broadcast %cst_9 : f32 to vector<8x128xf32>
    %14 = arith.subf %13, %12 : vector<8x128xf32>
    %15 = arith.mulf %11, %14 : vector<8x128xf32>
    %c0_10 = arith.constant 0 : index
    %c0_11 = arith.constant 0 : index
    %16 = vector.load %arg4[%c0_10, %c0_11] : memref<64x1024xf32, #tpu.memory_space<vmem>>, vector<64x1024xf32>
    %cst_12 = arith.constant dense<0.000000e+00> : vector<8x1024xf32>
    %17 = tpu.matmul %5, %16, %cst_12 {dimension_numbers = #tpu.dot_dimension_numbers<[1], [0], [0], [1], [0, 0, 1, 1], [], []>} : vector<8x64xf32>, vector<64x1024xf32>, vector<8x1024xf32> -> vector<8x1024xf32>
    %18 = vector.extract_strided_slice %17 {offsets = [0, 0], sizes = [8, 512], strides = [1, 1]} : vector<8x1024xf32> to vector<8x512xf32>
    %19 = vector.extract_strided_slice %17 {offsets = [0, 512], sizes = [8, 512], strides = [1, 1]} : vector<8x1024xf32> to vector<8x512xf32>
    %20 = arith.mulf %18, %19 : vector<8x512xf32>
    %c0_13 = arith.constant 0 : index
    %c0_14 = arith.constant 0 : index
    %21 = vector.load %arg6[%c0_13, %c0_14] : memref<512x128xf32, #tpu.memory_space<vmem>>, vector<512x128xf32>
    %cst_15 = arith.constant dense<0.000000e+00> : vector<8x128xf32>
    %22 = tpu.matmul %20, %21, %cst_15 {dimension_numbers = #tpu.dot_dimension_numbers<[1], [0], [0], [1], [0, 0, 1, 1], [], []>} : vector<8x512xf32>, vector<512x128xf32>, vector<8x128xf32> -> vector<8x128xf32>
    %23 = arith.mulf %22, %15 : vector<8x128xf32>
    %c0_16 = arith.constant 0 : index
    %c0_17 = arith.constant 0 : index
    %24 = vector.load %arg7[%c0_16, %c0_17] : memref<1x128xf32, #tpu.memory_space<vmem>>, vector<1x128xf32>
    %25 = vector.broadcast %24 : vector<1x128xf32> to vector<8x128xf32>
    %26 = arith.addf %23, %25 : vector<8x128xf32>
    %c0_18 = arith.constant 0 : index
    %c0_19 = arith.constant 0 : index
    %27 = vector.load %arg8[%c0_18, %c0_19] : memref<8x128xf32, #tpu.memory_space<vmem>>, vector<8x128xf32>
    tpu.vector_store %arg8[%c0_18, %c0_19], %26 {strides = array<i32>} : memref<8x128xf32, #tpu.memory_space<vmem>>, vector<8x128xf32>,
    return
  }
  func.func @transform_0(%arg0: i32) -> (i32, i32) {
    %c0_i32 = arith.constant 0 : i32
    %c0_i32_0 = arith.constant 0 : i32
    return %arg0, %c0_i32 : i32, i32
  }
  func.func @transform_1(%arg0: i32) -> (i32, i32) {
    %c0_i32 = arith.constant 0 : i32
    %c0_i32_0 = arith.constant 0 : i32
    %c0_i32_1 = arith.constant 0 : i32
    return %c0_i32, %c0_i32_0 : i32, i32
  }
  func.func @transform_2(%arg0: i32) -> (i32, i32) {
    %c0_i32 = arith.constant 0 : i32
    %c0_i32_0 = arith.constant 0 : i32
    %c0_i32_1 = arith.constant 0 : i32
    return %c0_i32, %c0_i32_0 : i32, i32
  }
  func.func @transform_3(%arg0: i32) -> (i32, i32) {
    %c0_i32 = arith.constant 0 : i32
    %c0_i32_0 = arith.constant 0 : i32
    %c0_i32_1 = arith.constant 0 : i32
    return %c0_i32, %c0_i32_0 : i32, i32
  }
  func.func @transform_4(%arg0: i32) -> (i32, i32) {
    %c0_i32 = arith.constant 0 : i32
    %c0_i32_0 = arith.constant 0 : i32
    %c0_i32_1 = arith.constant 0 : i32
    return %c0_i32, %c0_i32_0 : i32, i32
  }
  func.func @transform_5(%arg0: i32) -> (i32, i32) {
    %c0_i32 = arith.constant 0 : i32
    %c0_i32_0 = arith.constant 0 : i32
    %c0_i32_1 = arith.constant 0 : i32
    return %c0_i32, %c0_i32_0 : i32, i32
  }
  func.func @transform_6(%arg0: i32) -> (i32, i32) {
    %c0_i32 = arith.constant 0 : i32
    %c0_i32_0 = arith.constant 0 : i32
    %c0_i32_1 = arith.constant 0 : i32
    return %c0_i32, %c0_i32_0 : i32, i32
  }
  func.func @transform_7(%arg0: i32) -> (i32, i32) {
    %c0_i32 = arith.constant 0 : i32
    %c0_i32_0 = arith.constant 0 : i32
    return %arg0, %c0_i32 : i32, i32
  }
}

</mosaic_0001>

<llo_original>
// kernel: tpu_custom_call.1
$region0: #{tpu_custom_call.1}
  #allocation0 [shape = 'u32[]', space=smem, size = 0x4, offset = 0x4, fixed_abs, tag = 'smem constant byte address 0x4 - core index']
  #allocation1 [shape = 'u32[144,128]{1,0:T(1,128)}', space=vmem, size = 0x12000, scoped, tag = 'internal scratch']
  %s0 = inlined_call_operand.vmem [shape: f32[8,128], index: 0, kind: input, shape index: {}]
  %s1 = inlined_call_operand.vmem [shape: f32[128,64], index: 1, kind: input, shape index: {}]
  %s2 = inlined_call_operand.vmem [shape: f32[1,64], index: 2, kind: input, shape index: {}]
  %s3 = inlined_call_operand.hbm [shape: f32[64,1024], index: 3, kind: input, shape index: {}]
  %s4 = inlined_call_operand.vmem [shape: f32[64,128], index: 4, kind: input, shape index: {}]
  %s5 = inlined_call_operand.hbm [shape: f32[512,128], index: 5, kind: input, shape index: {}]
  %s6 = inlined_call_operand.vmem [shape: f32[1,128], index: 6, kind: input, shape index: {}]
  %s7 = inlined_call_operand.hbm [shape: f32[8,128], index: 7, kind: output, shape index: {}]
  %s8 = sld [smem:[#allocation0]]
  $region46: #{tpu_custom_call.1} parent=0
    _
  %s10 = ssub.s32 1, %s8
  %s11 = scalar_select 0, %s10, %s8
  $region1: #{tpu_custom_call.1} parent=0
    #allocation2 [shape = 'u8[262144]{0}', space=vmem, size = 0x40000, scoped, tag = 'input window, operand 3, single buffered']
    #allocation3 [shape = 's32[1]{0}', space=sflag, size = 0x4, scoped, tag = 'scoped memory for tpu_custom_call.1']
    #allocation4 [shape = 's32[1]{0}', space=sflag, size = 0x4, scoped, tag = 'scoped memory for tpu_custom_call.1']
    #allocation5 [shape = 'u8[262144]{0}', space=vmem, size = 0x40000, scoped, tag = 'input window, operand 5, single buffered']
    #allocation6 [shape = 's32[1]{0}', space=sflag, size = 0x4, scoped, tag = 'scoped memory for tpu_custom_call.1']
    #allocation7 [shape = 'u8[4096]{0}', space=vmem, size = 0x1000, scoped, tag = 'output window, operand 0, single buffered']
    %12 = vsyncpa [#allocation3], 0
    %13 = vsyncpa [#allocation6], 0
    %14 = vsyncpa [#allocation4], 0
    // Predicated region
    $region2: #{tpu_custom_call.1} parent=1 // pred_check
      _
    $region3: #{tpu_custom_call.1} parent=1 // pred_check_branch
      %16 = sbr.rel (0) target = $region5
    $region4: #{tpu_custom_call.1} parent=1 // pred_region
      _
    $region5: #{tpu_custom_call.1} parent=1 // pred_fallthru
      _
    // Predicated region
    $region6: #{tpu_custom_call.1} parent=1 // pred_check
      _
    $region7: #{tpu_custom_call.1} parent=1 // pred_check_branch
      %18 = sbr.rel (0) target = $region9
    $region8: #{tpu_custom_call.1} parent=1 // pred_region
      _
    $region9: #{tpu_custom_call.1} parent=1 // pred_fallthru
      _
    // Predicated region
    $region10: #{tpu_custom_call.1} parent=1 // pred_check
      _
    $region11: #{tpu_custom_call.1} parent=1 // pred_check_branch
      %20 = sbr.rel (0) target = $region13
    $region12: #{tpu_custom_call.1} parent=1 // pred_region
      _
    $region13: #{tpu_custom_call.1} parent=1 // pred_fallthru
      _
    // Predicated region
    $region14: #{tpu_custom_call.1} parent=1 // pred_check
      _
    $region15: #{tpu_custom_call.1} parent=1 // pred_check_branch
      %22 = sbr.rel (0) target = $region17
    $region16: #{tpu_custom_call.1} parent=1 // pred_region
      %s24 = ssub.s32 8192, 8192
      %25 = vsyncadd [#allocation3], %s24
      %s26 = sshll.u32 [#allocation2], 4
      %s27 = int_to_ptr.vmem [resolvable:$true] %s26
      %32 = dma.hbm_to_vmem [thread:$0]  %s3, 8192, %s27, [#allocation3], 1024, 1024, 64
    $region17: #{tpu_custom_call.1} parent=1 // pred_fallthru
      _
    // Predicated region
    $region18: #{tpu_custom_call.1} parent=1 // pred_check
      _
    $region19: #{tpu_custom_call.1} parent=1 // pred_check_branch
      %34 = sbr.rel (0) target = $region21
    $region20: #{tpu_custom_call.1} parent=1 // pred_region
      _
    $region21: #{tpu_custom_call.1} parent=1 // pred_fallthru
      _
    // Predicated region
    $region22: #{tpu_custom_call.1} parent=1 // pred_check
      _
    $region23: #{tpu_custom_call.1} parent=1 // pred_check_branch
      %36 = sbr.rel (0) target = $region25
    $region24: #{tpu_custom_call.1} parent=1 // pred_region
      %s38 = ssub.s32 8192, 8192
      %39 = vsyncadd [#allocation6], %s38
      %s40 = sshll.u32 [#allocation5], 4
      %s41 = int_to_ptr.vmem [resolvable:$true] %s40
      %46 = dma.hbm_to_vmem [thread:$0]  %s5, 8192, %s41, [#allocation6], 128, 128, 8
    $region25: #{tpu_custom_call.1} parent=1 // pred_fallthru
      _
    // Predicated region
    $region26: #{tpu_custom_call.1} parent=1 // pred_check
      _
    $region27: #{tpu_custom_call.1} parent=1 // pred_check_branch
      %48 = sbr.rel (0) target = $region29
    $region28: #{tpu_custom_call.1} parent=1 // pred_region
      _
    $region29: #{tpu_custom_call.1} parent=1 // pred_fallthru
      _
    // Predicated region
    $region30: #{tpu_custom_call.1} parent=1 // pred_check
      _
    $region31: #{tpu_custom_call.1} parent=1 // pred_check_branch
      %50 = sbr.rel (0) target = $region33
    $region32: #{tpu_custom_call.1} parent=1 // pred_region
      %51 = dma.done [#allocation3], 8192
    $region33: #{tpu_custom_call.1} parent=1 // pred_fallthru
      _
    // Predicated region
    $region34: #{tpu_custom_call.1} parent=1 // pred_check
      _
    $region35: #{tpu_custom_call.1} parent=1 // pred_check_branch
      %53 = sbr.rel (0) target = $region37
    $region36: #{tpu_custom_call.1} parent=1 // pred_region
      %54 = dma.done [#allocation6], 8192
    $region37: #{tpu_custom_call.1} parent=1 // pred_fallthru
      _
    %v55 = vld [vmem:[%s0] sm:$0xff]
    %v56 = vld [vmem:[%s1] sm:$0xff]
    %v57 = vld [vmem:[%s1 + $0x8] sm:$0xff]
    %v58 = vld [vmem:[%s1 + $0x10] sm:$0xff]
    %v59 = vld [vmem:[%s1 + $0x18] sm:$0xff]
    %v60 = vld [vmem:[%s1 + $0x20] sm:$0xff]
    %v61 = vld [vmem:[%s1 + $0x28] sm:$0xff]
    %v62 = vld [vmem:[%s1 + $0x30] sm:$0xff]
    %v63 = vld [vmem:[%s1 + $0x38] sm:$0xff]
    %v64 = vld [vmem:[%s1 + $0x40] sm:$0xff]
    %v65 = vld [vmem:[%s1 + $0x48] sm:$0xff]
    %v66 = vld [vmem:[%s1 + $0x50] sm:$0xff]
    %v67 = vld [vmem:[%s1 + $0x58] sm:$0xff]
    %v68 = vld [vmem:[%s1 + $0x60] sm:$0xff]
    %v69 = vld [vmem:[%s1 + $0x68] sm:$0xff]
    %v70 = vld [vmem:[%s1 + $0x70] sm:$0xff]
    %v71 = vld [vmem:[%s1 + $0x78] sm:$0xff]
    %v72 = vld [vmem:[%s2] sm:$0x1]
    %v74 = vlaneseq
    %v75 = vshrl.u32 %v74, 7
    %v76 = vsub.s32 0, %v75
    %v77 = vrot.slane %v72, %v76
    %79 = vmatprep.subr.mxu0 0.0
    %80 = vmatpush1.msra.mxu0 %v56
    %81 = vmatprep.subr.mxu0 0.0
    %82 = vmatpush1.msra.mxu0 %v57
    %83 = vmatprep.subr.mxu0 0.0
    %84 = vmatpush1.msra.mxu0 %v58
    %85 = vmatprep.subr.mxu0 0.0
    %86 = vmatpush1.msra.mxu0 %v59
    %87 = vmatprep.subr.mxu0 0.0
    %88 = vmatpush1.msra.mxu0 %v60
    %89 = vmatprep.subr.mxu0 0.0
    %90 = vmatpush1.msra.mxu0 %v61
    %91 = vmatprep.subr.mxu0 0.0
    %92 = vmatpush1.msra.mxu0 %v62
    %93 = vmatprep.subr.mxu0 0.0
    %94 = vmatpush1.msra.mxu0 %v63
    %95 = vmatprep.subr.mxu0 0.0
    %96 = vmatpush1.msra.mxu0 %v64
    %97 = vmatprep.subr.mxu0 0.0
    %98 = vmatpush1.msra.mxu0 %v65
    %99 = vmatprep.subr.mxu0 0.0
    %100 = vmatpush1.msra.mxu0 %v66
    %101 = vmatprep.subr.mxu0 0.0
    %102 = vmatpush1.msra.mxu0 %v67
    %103 = vmatprep.subr.mxu0 0.0
    %104 = vmatpush1.msra.mxu0 %v68
    %105 = vmatprep.subr.mxu0 0.0
    %106 = vmatpush1.msra.mxu0 %v69
    %107 = vmatprep.subr.mxu0 0.0
    %108 = vmatpush1.msra.mxu0 %v70
    %109 = vmatprep.subr.mxu0 0.0
    %110 = vmatpush1.msra.mxu0 %v71
    %111 = vmatprep.subr.mxu0 0.0
    %112 = vmatpush1.msra.mxu0 0.0
    %113 = vmatprep.subr.mxu0 0.0
    %114 = vmatpush1.msra.mxu0 0.0
    %115 = vmatprep.subr.mxu0 0.0
    %116 = vmatpush1.msra.mxu0 0.0
    %117 = vmatprep.subr.mxu0 0.0
    %118 = vmatpush1.msra.mxu0 0.0
    %119 = vmatprep.subr.mxu0 0.0
    %120 = vmatpush1.msra.mxu0 0.0
    %121 = vmatprep.subr.mxu0 0.0
    %122 = vmatpush1.msra.mxu0 0.0
    %123 = vmatprep.subr.mxu0 0.0
    %124 = vmatpush1.msra.mxu0 0.0
    %125 = vmatprep.subr.mxu0 0.0
    %126 = vmatpush1.msra.mxu0 0.0
    %127 = vmatprep.subr.mxu0 0.0
    %128 = vmatpush1.msra.mxu0 0.0
    %129 = vmatprep.subr.mxu0 0.0
    %130 = vmatpush1.msra.mxu0 0.0
    %131 = vmatprep.subr.mxu0 0.0
    %132 = vmatpush1.msra.mxu0 0.0
    %133 = vmatprep.subr.mxu0 0.0
    %134 = vmatpush1.msra.mxu0 0.0
    %135 = vmatprep.subr.mxu0 0.0
    %136 = vmatpush1.msra.mxu0 0.0
    %137 = vmatprep.subr.mxu0 0.0
    %138 = vmatpush1.msra.mxu0 0.0
    %139 = vmatprep.subr.mxu0 0.0
    %140 = vmatpush1.msra.mxu0 0.0
    %141 = vmatprep.subr.mxu0 0.0
    %142 = vmatpush1.msra.mxu0 0.0
    %143 = vmatprep.mubr.f32.mxu0 0.0
    %144 = vmatmul.mubr.f32.gmra.mrb[0].mxu0 %v55
    %v145 = vpop.f32.mrb[0].mxu0
    %v146 = vadd.f32 %v77, %v145
    %v147 = vpop.f32.mrb[0].mxu0
    %148 = vdwg.mxu0
    %v149 = vmul.f32 %v146, %v146
    %v150 = vld [vmem:[%s4] sm:$0xff]
    %v151 = vld [vmem:[%s4 + $0x8] sm:$0xff]
    %v152 = vld [vmem:[%s4 + $0x10] sm:$0xff]
    %v153 = vld [vmem:[%s4 + $0x18] sm:$0xff]
    %v154 = vld [vmem:[%s4 + $0x20] sm:$0xff]
    %v155 = vld [vmem:[%s4 + $0x28] sm:$0xff]
    %v156 = vld [vmem:[%s4 + $0x30] sm:$0xff]
    %v157 = vld [vmem:[%s4 + $0x38] sm:$0xff]
    %vm158 = vcmask 523264
    %v160 = vsel %vm158, %v149, 0
    %162 = vmatprep.subr.mxu0 0.0
    %163 = vmatpush1.msra.mxu0 %v150
    %164 = vmatprep.subr.mxu0 0.0
    %165 = vmatpush1.msra.mxu0 %v151
    %166 = vmatprep.subr.mxu0 0.0
    %167 = vmatpush1.msra.mxu0 %v152
    %168 = vmatprep.subr.mxu0 0.0
    %169 = vmatpush1.msra.mxu0 %v153
    %170 = vmatprep.subr.mxu0 0.0
    %171 = vmatpush1.msra.mxu0 %v154
    %172 = vmatprep.subr.mxu0 0.0
    %173 = vmatpush1.msra.mxu0 %v155
    %174 = vmatprep.subr.mxu0 0.0
    %175 = vmatpush1.msra.mxu0 %v156
    %176 = vmatprep.subr.mxu0 0.0
    %177 = vmatpush1.msra.mxu0 %v157
    %178 = vmatprep.subr.mxu0 0.0
    %179 = vmatpush1.msra.mxu0 0.0
    %180 = vmatprep.subr.mxu0 0.0
    %181 = vmatpush1.msra.mxu0 0.0
    %182 = vmatprep.subr.mxu0 0.0
    %183 = vmatpush1.msra.mxu0 0.0
    %184 = vmatprep.subr.mxu0 0.0
    %185 = vmatpush1.msra.mxu0 0.0
    %186 = vmatprep.subr.mxu0 0.0
    %187 = vmatpush1.msra.mxu0 0.0
    %188 = vmatprep.subr.mxu0 0.0
    %189 = vmatpush1.msra.mxu0 0.0
    %190 = vmatprep.subr.mxu0 0.0
    %191 = vmatpush1.msra.mxu0 0.0
    %192 = vmatprep.subr.mxu0 0.0
    %193 = vmatpush1.msra.mxu0 0.0
    %194 = vmatprep.subr.mxu0 0.0
    %195 = vmatpush1.msra.mxu0 0.0
    %196 = vmatprep.subr.mxu0 0.0
    %197 = vmatpush1.msra.mxu0 0.0
    %198 = vmatprep.subr.mxu0 0.0
    %199 = vmatpush1.msra.mxu0 0.0
    %200 = vmatprep.subr.mxu0 0.0
    %201 = vmatpush1.msra.mxu0 0.0
    %202 = vmatprep.subr.mxu0 0.0
    %203 = vmatpush1.msra.mxu0 0.0
    %204 = vmatprep.subr.mxu0 0.0
    %205 = vmatpush1.msra.mxu0 0.0
    %206 = vmatprep.subr.mxu0 0.0
    %207 = vmatpush1.msra.mxu0 0.0
    %208 = vmatprep.subr.mxu0 0.0
    %209 = vmatpush1.msra.mxu0 0.0
    %210 = vmatprep.subr.mxu0 0.0
    %211 = vmatpush1.msra.mxu0 0.0
    %212 = vmatprep.subr.mxu0 0.0
    %213 = vmatpush1.msra.mxu0 0.0
    %214 = vmatprep.subr.mxu0 0.0
    %215 = vmatpush1.msra.mxu0 0.0
    %216 = vmatprep.subr.mxu0 0.0
    %217 = vmatpush1.msra.mxu0 0.0
    %218 = vmatprep.subr.mxu0 0.0
    %219 = vmatpush1.msra.mxu0 0.0
    %220 = vmatprep.subr.mxu0 0.0
    %221 = vmatpush1.msra.mxu0 0.0
    %222 = vmatprep.subr.mxu0 0.0
    %223 = vmatpush1.msra.mxu0 0.0
    %224 = vmatprep.subr.mxu0 0.0
    %225 = vmatpush1.msra.mxu0 0.0
    %226 = vmatprep.mubr.f32.mxu0 0.0
    %227 = vmatmul.mubr.f32.gmra.mrb[0].mxu0 %v160
    %v228 = vpop.f32.mrb[0].mxu0
    %v229 = vadd.f32 0.0, %v228
    %v230 = vpop.f32.mrb[0].mxu0
    %231 = vdwg.mxu0
    %v232 = vmax.f32 %v229, 1e-30
    %v233 = vrcp.pop %v232
    %v234 = vmul.f32 %v232, %v233
    %v235 = vsub.f32 2.0, %v234
    %v236 = vmul.f32 %v233, %v235
    %v237 = vld [vmem:[#allocation2] sm:$0xff]
    %v238 = vld [vmem:[#allocation2 + $0x8] sm:$0xff]
    %v239 = vld [vmem:[#allocation2 + $0x10] sm:$0xff]
    %v240 = vld [vmem:[#allocation2 + $0x18] sm:$0xff]
    %v241 = vld [vmem:[#allocation2 + $0x20] sm:$0xff]
    %v242 = vld [vmem:[#allocation2 + $0x28] sm:$0xff]
    %v243 = vld [vmem:[#allocation2 + $0x30] sm:$0xff]
    %v244 = vld [vmem:[#allocation2 + $0x38] sm:$0xff]
    %v245 = vld [vmem:[#allocation2 + $0x40] sm:$0xff]
    %v246 = vld [vmem:[#allocation2 + $0x48] sm:$0xff]
    %v247 = vld [vmem:[#allocation2 + $0x50] sm:$0xff]
    %v248 = vld [vmem:[#allocation2 + $0x58] sm:$0xff]
    %v249 = vld [vmem:[#allocation2 + $0x60] sm:$0xff]
    %v250 = vld [vmem:[#allocation2 + $0x68] sm:$0xff]
    %v251 = vld [vmem:[#allocation2 + $0x70] sm:$0xff]
    %v252 = vld [vmem:[#allocation2 + $0x78] sm:$0xff]
    %v253 = vld [vmem:[#allocation2 + $0x80] sm:$0xff]
    %v254 = vld [vmem:[#allocation2 + $0x88] sm:$0xff]
    %v255 = vld [vmem:[#allocation2 + $0x90] sm:$0xff]
    %v256 = vld [vmem:[#allocation2 + $0x98] sm:$0xff]
    %v257 = vld [vmem:[#allocation2 + $0xa0] sm:$0xff]
    %v258 = vld [vmem:[#allocation2 + $0xa8] sm:$0xff]
    %v259 = vld [vmem:[#allocation2 + $0xb0] sm:$0xff]
    %v260 = vld [vmem:[#allocation2 + $0xb8] sm:$0xff]
    %v261 = vld [vmem:[#allocation2 + $0xc0] sm:$0xff]
    %v262 = vld [vmem:[#allocation2 + $0xc8] sm:$0xff]
    %v263 = vld [vmem:[#allocation2 + $0xd0] sm:$0xff]
    %v264 = vld [vmem:[#allocation2 + $0xd8] sm:$0xff]
    %v265 = vld [vmem:[#allocation2 + $0xe0] sm:$0xff]
    %v266 = vld [vmem:[#allocation2 + $0xe8] sm:$0xff]
    %v267 = vld [vmem:[#allocation2 + $0xf0] sm:$0xff]
    %v268 = vld [vmem:[#allocation2 + $0xf8] sm:$0xff]
    %v269 = vld [vmem:[#allocation2 + $0x100] sm:$0xff]
    %v270 = vld [vmem:[#allocation2 + $0x108] sm:$0xff]
    %v271 = vld [vmem:[#allocation2 + $0x110] sm:$0xff]
    %v272 = vld [vmem:[#allocation2 + $0x118] sm:$0xff]
    %v273 = vld [vmem:[#allocation2 + $0x120] sm:$0xff]
    %v274 = vld [vmem:[#allocation2 + $0x128] sm:$0xff]
    %v275 = vld [vmem:[#allocation2 + $0x130] sm:$0xff]
    %v276 = vld [vmem:[#allocation2 + $0x138] sm:$0xff]
    %v277 = vld [vmem:[#allocation2 + $0x140] sm:$0xff]
    %v278 = vld [vmem:[#allocation2 + $0x148] sm:$0xff]
    %v279 = vld [vmem:[#allocation2 + $0x150] sm:$0xff]
    %v280 = vld [vmem:[#allocation2 + $0x158] sm:$0xff]
    %v281 = vld [vmem:[#allocation2 + $0x160] sm:$0xff]
    %v282 = vld [vmem:[#allocation2 + $0x168] sm:$0xff]
    %v283 = vld [vmem:[#allocation2 + $0x170] sm:$0xff]
    %v284 = vld [vmem:[#allocation2 + $0x178] sm:$0xff]
    %v285 = vld [vmem:[#allocation2 + $0x180] sm:$0xff]
    %v286 = vld [vmem:[#allocation2 + $0x188] sm:$0xff]
    %v287 = vld [vmem:[#allocation2 + $0x190] sm:$0xff]
    %v288 = vld [vmem:[#allocation2 + $0x198] sm:$0xff]
    %v289 = vld [vmem:[#allocation2 + $0x1a0] sm:$0xff]
    %v290 = vld [vmem:[#allocation2 + $0x1a8] sm:$0xff]
    %v291 = vld [vmem:[#allocation2 + $0x1b0] sm:$0xff]
    %v292 = vld [vmem:[#allocation2 + $0x1b8] sm:$0xff]
    %v293 = vld [vmem:[#allocation2 + $0x1c0] sm:$0xff]
    %v294 = vld [vmem:[#allocation2 + $0x1c8] sm:$0xff]
    %v295 = vld [vmem:[#allocation2 + $0x1d0] sm:$0xff]
    %v296 = vld [vmem:[#allocation2 + $0x1d8] sm:$0xff]
    %v297 = vld [vmem:[#allocation2 + $0x1e0] sm:$0xff]
    %v298 = vld [vmem:[#allocation2 + $0x1e8] sm:$0xff]
    %v299 = vld [vmem:[#allocation2 + $0x1f0] sm:$0xff]
    %v300 = vld [vmem:[#allocation2 + $0x1f8] sm:$0xff]
    %v302 = vsel %vm158, %v146, 0
    %304 = vmatprep.subr.mxu0 %v238
    %305 = vmatpush1.msra.mxu0 %v237
    %306 = vmatprep.subr.mxu0 %v246
    %307 = vmatpush1.msra.mxu0 %v245
    %308 = vmatprep.subr.mxu0 %v254
    %309 = vmatpush1.msra.mxu0 %v253
    %310 = vmatprep.subr.mxu0 %v262
    %311 = vmatpush1.msra.mxu0 %v261
    %312 = vmatprep.subr.mxu0 %v270
    %313 = vmatpush1.msra.mxu0 %v269
    %314 = vmatprep.subr.mxu0 %v278
    %315 = vmatpush1.msra.mxu0 %v277
    %316 = vmatprep.subr.mxu0 %v286
    %317 = vmatpush1.msra.mxu0 %v285
    %318 = vmatprep.subr.mxu0 %v294
    %319 = vmatpush1.msra.mxu0 %v293
    %320 = vmatprep.subr.mxu0 0.0
    %321 = vmatpush1.msra.mxu0 0.0
    %322 = vmatprep.subr.mxu0 0.0
    %323 = vmatpush1.msra.mxu0 0.0
    %324 = vmatprep.subr.mxu0 0.0
    %325 = vmatpush1.msra.mxu0 0.0
    %326 = vmatprep.subr.mxu0 0.0
    %327 = vmatpush1.msra.mxu0 0.0
    %328 = vmatprep.subr.mxu0 0.0
    %329 = vmatpush1.msra.mxu0 0.0
    %330 = vmatprep.subr.mxu0 0.0
    %331 = vmatpush1.msra.mxu0 0.0
    %332 = vmatprep.subr.mxu0 0.0
    %333 = vmatpush1.msra.mxu0 0.0
    %334 = vmatprep.subr.mxu0 0.0
    %335 = vmatpush1.msra.mxu0 0.0
    %336 = vmatprep.subr.mxu0 0.0
    %337 = vmatpush1.msra.mxu0 0.0
    %338 = vmatprep.subr.mxu0 0.0
    %339 = vmatpush1.msra.mxu0 0.0
    %340 = vmatprep.subr.mxu0 0.0
    %341 = vmatpush1.msra.mxu0 0.0
    %342 = vmatprep.subr.mxu0 0.0
    %343 = vmatpush1.msra.mxu0 0.0
    %344 = vmatprep.subr.mxu0 0.0
    %345 = vmatpush1.msra.mxu0 0.0
    %346 = vmatprep.subr.mxu0 0.0
    %347 = vmatpush1.msra.mxu0 0.0
    %348 = vmatprep.subr.mxu0 0.0
    %349 = vmatpush1.msra.mxu0 0.0
    %350 = vmatprep.subr.mxu0 0.0
    %351 = vmatpush1.msra.mxu0 0.0
    %352 = vmatprep.subr.mxu0 0.0
    %353 = vmatpush1.msra.mxu0 0.0
    %354 = vmatprep.subr.mxu0 0.0
    %355 = vmatpush1.msra.mxu0 0.0
    %356 = vmatprep.subr.mxu0 0.0
    %357 = vmatpush1.msra.mxu0 0.0
    %358 = vmatprep.subr.mxu0 0.0
    %359 = vmatpush1.msra.mxu0 0.0
    %360 = vmatprep.subr.mxu0 0.0
    %361 = vmatpush1.msra.mxu0 0.0
    %362 = vmatprep.subr.mxu0 0.0
    %363 = vmatpush1.msra.mxu0 0.0
    %364 = vmatprep.subr.mxu0 0.0
    %365 = vmatpush1.msra.mxu0 0.0
    %366 = vmatprep.subr.mxu0 0.0
    %367 = vmatpush1.msra.mxu0 0.0
    %368 = vmatprep.mubr.f32.mxu0 0.0
    %369 = vmatmul.mubr.f32.gmra.mrb[0].mxu0 %v302
    %v370 = vpop.f32.mrb[0].mxu0
    %v371 = vadd.f32 0.0, %v370
    %v372 = vpop.f32.mrb[0].mxu0
    %v373 = vadd.f32 0.0, %v372
    %374 = vdwg.mxu0
    %375 = vmatprep.subr.mxu0 %v240
    %376 = vmatpush1.msra.mxu0 %v239
    %377 = vmatprep.subr.mxu0 %v248
    %378 = vmatpush1.msra.mxu0 %v247
    %379 = vmatprep.subr.mxu0 %v256
    %380 = vmatpush1.msra.mxu0 %v255
    %381 = vmatprep.subr.mxu0 %v264
    %382 = vmatpush1.msra.mxu0 %v263
    %383 = vmatprep.subr.mxu0 %v272
    %384 = vmatpush1.msra.mxu0 %v271
    %385 = vmatprep.subr.mxu0 %v280
    %386 = vmatpush1.msra.mxu0 %v279
    %387 = vmatprep.subr.mxu0 %v288
    %388 = vmatpush1.msra.mxu0 %v287
    %389 = vmatprep.subr.mxu0 %v296
    %390 = vmatpush1.msra.mxu0 %v295
    %391 = vmatprep.subr.mxu0 0.0
    %392 = vmatpush1.msra.mxu0 0.0
    %393 = vmatprep.subr.mxu0 0.0
    %394 = vmatpush1.msra.mxu0 0.0
    %395 = vmatprep.subr.mxu0 0.0
    %396 = vmatpush1.msra.mxu0 0.0
    %397 = vmatprep.subr.mxu0 0.0
    %398 = vmatpush1.msra.mxu0 0.0
    %399 = vmatprep.subr.mxu0 0.0
    %400 = vmatpush1.msra.mxu0 0.0
    %401 = vmatprep.subr.mxu0 0.0
    %402 = vmatpush1.msra.mxu0 0.0
    %403 = vmatprep.subr.mxu0 0.0
    %404 = vmatpush1.msra.mxu0 0.0
    %405 = vmatprep.subr.mxu0 0.0
    %406 = vmatpush1.msra.mxu0 0.0
    %407 = vmatprep.subr.mxu0 0.0
    %408 = vmatpush1.msra.mxu0 0.0
    %409 = vmatprep.subr.mxu0 0.0
    %410 = vmatpush1.msra.mxu0 0.0
    %411 = vmatprep.subr.mxu0 0.0
    %412 = vmatpush1.msra.mxu0 0.0
    %413 = vmatprep.subr.mxu0 0.0
    %414 = vmatpush1.msra.mxu0 0.0
    %415 = vmatprep.subr.mxu0 0.0
    %416 = vmatpush1.msra.mxu0 0.0
    %417 = vmatprep.subr.mxu0 0.0
    %418 = vmatpush1.msra.mxu0 0.0
    %419 = vmatprep.subr.mxu0 0.0
    %420 = vmatpush1.msra.mxu0 0.0
    %421 = vmatprep.subr.mxu0 0.0
    %422 = vmatpush1.msra.mxu0 0.0
    %423 = vmatprep.subr.mxu0 0.0
    %424 = vmatpush1.msra.mxu0 0.0
    %425 = vmatprep.subr.mxu0 0.0
    %426 = vmatpush1.msra.mxu0 0.0
    %427 = vmatprep.subr.mxu0 0.0
    %428 = vmatpush1.msra.mxu0 0.0
    %429 = vmatprep.subr.mxu0 0.0
    %430 = vmatpush1.msra.mxu0 0.0
    %431 = vmatprep.subr.mxu0 0.0
    %432 = vmatpush1.msra.mxu0 0.0
    %433 = vmatprep.subr.mxu0 0.0
    %434 = vmatpush1.msra.mxu0 0.0
    %435 = vmatprep.subr.mxu0 0.0
    %436 = vmatpush1.msra.mxu0 0.0
    %437 = vmatprep.subr.mxu0 0.0
    %438 = vmatpush1.msra.mxu0 0.0
    %439 = vmatprep.mubr.f32.mxu0 0.0
    %440 = vmatmul.mubr.f32.gmra.mrb[0].mxu0 %v302
    %v441 = vpop.f32.mrb[0].mxu0
    %v442 = vadd.f32 0.0, %v441
    %v443 = vpop.f32.mrb[0].mxu0
    %v444 = vadd.f32 0.0, %v443
    %445 = vdwg.mxu0
    %446 = vmatprep.subr.mxu0 %v242
    %447 = vmatpush1.msra.mxu0 %v241
    %448 = vmatprep.subr.mxu0 %v250
    %449 = vmatpush1.msra.mxu0 %v249
    %450 = vmatprep.subr.mxu0 %v258
    %451 = vmatpush1.msra.mxu0 %v257
    %452 = vmatprep.subr.mxu0 %v266
    %453 = vmatpush1.msra.mxu0 %v265
    %454 = vmatprep.subr.mxu0 %v274
    %455 = vmatpush1.msra.mxu0 %v273
    %456 = vmatprep.subr.mxu0 %v282
    %457 = vmatpush1.msra.mxu0 %v281
    %458 = vmatprep.subr.mxu0 %v290
    %459 = vmatpush1.msra.mxu0 %v289
    %460 = vmatprep.subr.mxu0 %v298
    %461 = vmatpush1.msra.mxu0 %v297
    %462 = vmatprep.subr.mxu0 0.0
    %463 = vmatpush1.msra.mxu0 0.0
    %464 = vmatprep.subr.mxu0 0.0
    %465 = vmatpush1.msra.mxu0 0.0
    %466 = vmatprep.subr.mxu0 0.0
    %467 = vmatpush1.msra.mxu0 0.0
    %468 = vmatprep.subr.mxu0 0.0
    %469 = vmatpush1.msra.mxu0 0.0
    %470 = vmatprep.subr.mxu0 0.0
    %471 = vmatpush1.msra.mxu0 0.0
    %472 = vmatprep.subr.mxu0 0.0
    %473 = vmatpush1.msra.mxu0 0.0
    %474 = vmatprep.subr.mxu0 0.0
    %475 = vmatpush1.msra.mxu0 0.0
    %476 = vmatprep.subr.mxu0 0.0
    %477 = vmatpush1.msra.mxu0 0.0
    %478 = vmatprep.subr.mxu0 0.0
    %479 = vmatpush1.msra.mxu0 0.0
    %480 = vmatprep.subr.mxu0 0.0
    %481 = vmatpush1.msra.mxu0 0.0
    %482 = vmatprep.subr.mxu0 0.0
    %483 = vmatpush1.msra.mxu0 0.0
    %484 = vmatprep.subr.mxu0 0.0
    %485 = vmatpush1.msra.mxu0 0.0
    %486 = vmatprep.subr.mxu0 0.0
    %487 = vmatpush1.msra.mxu0 0.0
    %488 = vmatprep.subr.mxu0 0.0
    %489 = vmatpush1.msra.mxu0 0.0
    %490 = vmatprep.subr.mxu0 0.0
    %491 = vmatpush1.msra.mxu0 0.0
    %492 = vmatprep.subr.mxu0 0.0
    %493 = vmatpush1.msra.mxu0 0.0
    %494 = vmatprep.subr.mxu0 0.0
    %495 = vmatpush1.msra.mxu0 0.0
    %496 = vmatprep.subr.mxu0 0.0
    %497 = vmatpush1.msra.mxu0 0.0
    %498 = vmatprep.subr.mxu0 0.0
    %499 = vmatpush1.msra.mxu0 0.0
    %500 = vmatprep.subr.mxu0 0.0
    %501 = vmatpush1.msra.mxu0 0.0
    %502 = vmatprep.subr.mxu0 0.0
    %503 = vmatpush1.msra.mxu0 0.0
    %504 = vmatprep.subr.mxu0 0.0
    %505 = vmatpush1.msra.mxu0 0.0
    %506 = vmatprep.subr.mxu0 0.0
    %507 = vmatpush1.msra.mxu0 0.0
    %508 = vmatprep.subr.mxu0 0.0
    %509 = vmatpush1.msra.mxu0 0.0
    %510 = vmatprep.mubr.f32.mxu0 0.0
    %511 = vmatmul.mubr.f32.gmra.mrb[0].mxu0 %v302
    %v512 = vpop.f32.mrb[0].mxu0
    %v513 = vadd.f32 0.0, %v512
    %v514 = vpop.f32.mrb[0].mxu0
    %v515 = vadd.f32 0.0, %v514
    %516 = vdwg.mxu0
    %517 = vmatprep.subr.mxu0 %v244
    %518 = vmatpush1.msra.mxu0 %v243
    %519 = vmatprep.subr.mxu0 %v252
    %520 = vmatpush1.msra.mxu0 %v251
    %521 = vmatprep.subr.mxu0 %v260
    %522 = vmatpush1.msra.mxu0 %v259
    %523 = vmatprep.subr.mxu0 %v268
    %524 = vmatpush1.msra.mxu0 %v267
    %525 = vmatprep.subr.mxu0 %v276
    %526 = vmatpush1.msra.mxu0 %v275
    %527 = vmatprep.subr.mxu0 %v284
    %528 = vmatpush1.msra.mxu0 %v283
    %529 = vmatprep.subr.mxu0 %v292
    %530 = vmatpush1.msra.mxu0 %v291
    %531 = vmatprep.subr.mxu0 %v300
    %532 = vmatpush1.msra.mxu0 %v299
    %533 = vmatprep.subr.mxu0 0.0
    %534 = vmatpush1.msra.mxu0 0.0
    %535 = vmatprep.subr.mxu0 0.0
    %536 = vmatpush1.msra.mxu0 0.0
    %537 = vmatprep.subr.mxu0 0.0
    %538 = vmatpush1.msra.mxu0 0.0
    %539 = vmatprep.subr.mxu0 0.0
    %540 = vmatpush1.msra.mxu0 0.0
    %541 = vmatprep.subr.mxu0 0.0
    %542 = vmatpush1.msra.mxu0 0.0
    %543 = vmatprep.subr.mxu0 0.0
    %544 = vmatpush1.msra.mxu0 0.0
    %545 = vmatprep.subr.mxu0 0.0
    %546 = vmatpush1.msra.mxu0 0.0
    %547 = vmatprep.subr.mxu0 0.0
    %548 = vmatpush1.msra.mxu0 0.0
    %549 = vmatprep.subr.mxu0 0.0
    %550 = vmatpush1.msra.mxu0 0.0
    %551 = vmatprep.subr.mxu0 0.0
    %552 = vmatpush1.msra.mxu0 0.0
    %553 = vmatprep.subr.mxu0 0.0
    %554 = vmatpush1.msra.mxu0 0.0
    %555 = vmatprep.subr.mxu0 0.0
    %556 = vmatpush1.msra.mxu0 0.0
    %557 = vmatprep.subr.mxu0 0.0
    %558 = vmatpush1.msra.mxu0 0.0
    %559 = vmatprep.subr.mxu0 0.0
    %560 = vmatpush1.msra.mxu0 0.0
    %561 = vmatprep.subr.mxu0 0.0
    %562 = vmatpush1.msra.mxu0 0.0
    %563 = vmatprep.subr.mxu0 0.0
    %564 = vmatpush1.msra.mxu0 0.0
    %565 = vmatprep.subr.mxu0 0.0
    %566 = vmatpush1.msra.mxu0 0.0
    %567 = vmatprep.subr.mxu0 0.0
    %568 = vmatpush1.msra.mxu0 0.0
    %569 = vmatprep.subr.mxu0 0.0
    %570 = vmatpush1.msra.mxu0 0.0
    %571 = vmatprep.subr.mxu0 0.0
    %572 = vmatpush1.msra.mxu0 0.0
    %573 = vmatprep.subr.mxu0 0.0
    %574 = vmatpush1.msra.mxu0 0.0
    %575 = vmatprep.subr.mxu0 0.0
    %576 = vmatpush1.msra.mxu0 0.0
    %577 = vmatprep.subr.mxu0 0.0
    %578 = vmatpush1.msra.mxu0 0.0
    %579 = vmatprep.subr.mxu0 0.0
    %580 = vmatpush1.msra.mxu0 0.0
    %581 = vmatprep.mubr.f32.mxu0 0.0
    %582 = vmatmul.mubr.f32.gmra.mrb[0].mxu0 %v302
    %v583 = vpop.f32.mrb[0].mxu0
    %v584 = vadd.f32 0.0, %v583
    %v585 = vpop.f32.mrb[0].mxu0
    %v586 = vadd.f32 0.0, %v585
    %587 = vdwg.mxu0
    %v588 = vmul.f32 %v371, %v513
    %v589 = vmul.f32 %v373, %v515
    %v590 = vmul.f32 %v442, %v584
    %v591 = vmul.f32 %v444, %v586
    %v592 = vld [vmem:[#allocation5] sm:$0xff]
    %v593 = vld [vmem:[#allocation5 + $0x8] sm:$0xff]
    %v594 = vld [vmem:[#allocation5 + $0x10] sm:$0xff]
    %v595 = vld [vmem:[#allocation5 + $0x18] sm:$0xff]
    %v596 = vld [vmem:[#allocation5 + $0x20] sm:$0xff]
    %v597 = vld [vmem:[#allocation5 + $0x28] sm:$0xff]
    %v598 = vld [vmem:[#allocation5 + $0x30] sm:$0xff]
    %v599 = vld [vmem:[#allocation5 + $0x38] sm:$0xff]
    %v600 = vld [vmem:[#allocation5 + $0x40] sm:$0xff]
    %v601 = vld [vmem:[#allocation5 + $0x48] sm:$0xff]
    %v602 = vld [vmem:[#allocation5 + $0x50] sm:$0xff]
    %v603 = vld [vmem:[#allocation5 + $0x58] sm:$0xff]
    %v604 = vld [vmem:[#allocation5 + $0x60] sm:$0xff]
    %v605 = vld [vmem:[#allocation5 + $0x68] sm:$0xff]
    %v606 = vld [vmem:[#allocation5 + $0x70] sm:$0xff]
    %v607 = vld [vmem:[#allocation5 + $0x78] sm:$0xff]
    %v608 = vld [vmem:[#allocation5 + $0x80] sm:$0xff]
    %v609 = vld [vmem:[#allocation5 + $0x88] sm:$0xff]
    %v610 = vld [vmem:[#allocation5 + $0x90] sm:$0xff]
    %v611 = vld [vmem:[#allocation5 + $0x98] sm:$0xff]
    %v612 = vld [vmem:[#allocation5 + $0xa0] sm:$0xff]
    %v613 = vld [vmem:[#allocation5 + $0xa8] sm:$0xff]
    %v614 = vld [vmem:[#allocation5 + $0xb0] sm:$0xff]
    %v615 = vld [vmem:[#allocation5 + $0xb8] sm:$0xff]
    %v616 = vld [vmem:[#allocation5 + $0xc0] sm:$0xff]
    %v617 = vld [vmem:[#allocation5 + $0xc8] sm:$0xff]
    %v618 = vld [vmem:[#allocation5 + $0xd0] sm:$0xff]
    %v619 = vld [vmem:[#allocation5 + $0xd8] sm:$0xff]
    %v620 = vld [vmem:[#allocation5 + $0xe0] sm:$0xff]
    %v621 = vld [vmem:[#allocation5 + $0xe8] sm:$0xff]
    %v622 = vld [vmem:[#allocation5 + $0xf0] sm:$0xff]
    %v623 = vld [vmem:[#allocation5 + $0xf8] sm:$0xff]
    %v624 = vld [vmem:[#allocation5 + $0x100] sm:$0xff]
    %v625 = vld [vmem:[#allocation5 + $0x108] sm:$0xff]
    %v626 = vld [vmem:[#allocation5 + $0x110] sm:$0xff]
    %v627 = vld [vmem:[#allocation5 + $0x118] sm:$0xff]
    %v628 = vld [vmem:[#allocation5 + $0x120] sm:$0xff]
    %v629 = vld [vmem:[#allocation5 + $0x128] sm:$0xff]
    %v630 = vld [vmem:[#allocation5 + $0x130] sm:$0xff]
    %v631 = vld [vmem:[#allocation5 + $0x138] sm:$0xff]
    %v632 = vld [vmem:[#allocation5 + $0x140] sm:$0xff]
    %v633 = vld [vmem:[#allocation5 + $0x148] sm:$0xff]
    %v634 = vld [vmem:[#allocation5 + $0x150] sm:$0xff]
    %v635 = vld [vmem:[#allocation5 + $0x158] sm:$0xff]
    %v636 = vld [vmem:[#allocation5 + $0x160] sm:$0xff]
    %v637 = vld [vmem:[#allocation5 + $0x168] sm:$0xff]
    %v638 = vld [vmem:[#allocation5 + $0x170] sm:$0xff]
    %v639 = vld [vmem:[#allocation5 + $0x178] sm:$0xff]
    %v640 = vld [vmem:[#allocation5 + $0x180] sm:$0xff]
    %v641 = vld [vmem:[#allocation5 + $0x188] sm:$0xff]
    %v642 = vld [vmem:[#allocation5 + $0x190] sm:$0xff]
    %v643 = vld [vmem:[#allocation5 + $0x198] sm:$0xff]
    %v644 = vld [vmem:[#allocation5 + $0x1a0] sm:$0xff]
    %v645 = vld [vmem:[#allocation5 + $0x1a8] sm:$0xff]
    %v646 = vld [vmem:[#allocation5 + $0x1b0] sm:$0xff]
    %v647 = vld [vmem:[#allocation5 + $0x1b8] sm:$0xff]
    %v648 = vld [vmem:[#allocation5 + $0x1c0] sm:$0xff]
    %v649 = vld [vmem:[#allocation5 + $0x1c8] sm:$0xff]
    %v650 = vld [vmem:[#allocation5 + $0x1d0] sm:$0xff]
    %v651 = vld [vmem:[#allocation5 + $0x1d8] sm:$0xff]
    %v652 = vld [vmem:[#allocation5 + $0x1e0] sm:$0xff]
    %v653 = vld [vmem:[#allocation5 + $0x1e8] sm:$0xff]
    %v654 = vld [vmem:[#allocation5 + $0x1f0] sm:$0xff]
    %v655 = vld [vmem:[#allocation5 + $0x1f8] sm:$0xff]
    %656 = vmatprep.subr.mxu0 0.0
    %657 = vmatpush1.msra.mxu0 %v592
    %658 = vmatprep.subr.mxu0 0.0
    %659 = vmatpush1.msra.mxu0 %v593
    %660 = vmatprep.subr.mxu0 0.0
    %661 = vmatpush1.msra.mxu0 %v594
    %662 = vmatprep.subr.mxu0 0.0
    %663 = vmatpush1.msra.mxu0 %v595
    %664 = vmatprep.subr.mxu0 0.0
    %665 = vmatpush1.msra.mxu0 %v596
    %666 = vmatprep.subr.mxu0 0.0
    %667 = vmatpush1.msra.mxu0 %v597
    %668 = vmatprep.subr.mxu0 0.0
    %669 = vmatpush1.msra.mxu0 %v598
    %670 = vmatprep.subr.mxu0 0.0
    %671 = vmatpush1.msra.mxu0 %v599
    %672 = vmatprep.subr.mxu0 0.0
    %673 = vmatpush1.msra.mxu0 %v600
    %674 = vmatprep.subr.mxu0 0.0
    %675 = vmatpush1.msra.mxu0 %v601
    %676 = vmatprep.subr.mxu0 0.0
    %677 = vmatpush1.msra.mxu0 %v602
    %678 = vmatprep.subr.mxu0 0.0
    %679 = vmatpush1.msra.mxu0 %v603
    %680 = vmatprep.subr.mxu0 0.0
    %681 = vmatpush1.msra.mxu0 %v604
    %682 = vmatprep.subr.mxu0 0.0
    %683 = vmatpush1.msra.mxu0 %v605
    %684 = vmatprep.subr.mxu0 0.0
    %685 = vmatpush1.msra.mxu0 %v606
    %686 = vmatprep.subr.mxu0 0.0
    %687 = vmatpush1.msra.mxu0 %v607
    %688 = vmatprep.subr.mxu0 0.0
    %689 = vmatpush1.msra.mxu0 %v608
    %690 = vmatprep.subr.mxu0 0.0
    %691 = vmatpush1.msra.mxu0 %v609
    %692 = vmatprep.subr.mxu0 0.0
    %693 = vmatpush1.msra.mxu0 %v610
    %694 = vmatprep.subr.mxu0 0.0
    %695 = vmatpush1.msra.mxu0 %v611
    %696 = vmatprep.subr.mxu0 0.0
    %697 = vmatpush1.msra.mxu0 %v612
    %698 = vmatprep.subr.mxu0 0.0
    %699 = vmatpush1.msra.mxu0 %v613
    %700 = vmatprep.subr.mxu0 0.0
    %701 = vmatpush1.msra.mxu0 %v614
    %702 = vmatprep.subr.mxu0 0.0
    %703 = vmatpush1.msra.mxu0 %v615
    %704 = vmatprep.subr.mxu0 0.0
    %705 = vmatpush1.msra.mxu0 %v616
    %706 = vmatprep.subr.mxu0 0.0
    %707 = vmatpush1.msra.mxu0 %v617
    %708 = vmatprep.subr.mxu0 0.0
    %709 = vmatpush1.msra.mxu0 %v618
    %710 = vmatprep.subr.mxu0 0.0
    %711 = vmatpush1.msra.mxu0 %v619
    %712 = vmatprep.subr.mxu0 0.0
    %713 = vmatpush1.msra.mxu0 %v620
    %714 = vmatprep.subr.mxu0 0.0
    %715 = vmatpush1.msra.mxu0 %v621
    %716 = vmatprep.subr.mxu0 0.0
    %717 = vmatpush1.msra.mxu0 %v622
    %718 = vmatprep.subr.mxu0 0.0
    %719 = vmatpush1.msra.mxu0 %v623
    %720 = vmatprep.mubr.f32.mxu0 %v589
    %721 = vmatmul.mubr.f32.gmra.mrb[0].mxu0 %v588
    %v722 = vpop.f32.mrb[0].mxu0
    %v723 = vadd.f32 0.0, %v722
    %v724 = vpop.f32.mrb[0].mxu0
    %725 = vdwg.mxu0
    %726 = vmatprep.subr.mxu0 0.0
    %727 = vmatpush1.msra.mxu0 %v624
    %728 = vmatprep.subr.mxu0 0.0
    %729 = vmatpush1.msra.mxu0 %v625
    %730 = vmatprep.subr.mxu0 0.0
    %731 = vmatpush1.msra.mxu0 %v626
    %732 = vmatprep.subr.mxu0 0.0
    %733 = vmatpush1.msra.mxu0 %v627
    %734 = vmatprep.subr.mxu0 0.0
    %735 = vmatpush1.msra.mxu0 %v628
    %736 = vmatprep.subr.mxu0 0.0
    %737 = vmatpush1.msra.mxu0 %v629
    %738 = vmatprep.subr.mxu0 0.0
    %739 = vmatpush1.msra.mxu0 %v630
    %740 = vmatprep.subr.mxu0 0.0
    %741 = vmatpush1.msra.mxu0 %v631
    %742 = vmatprep.subr.mxu0 0.0
    %743 = vmatpush1.msra.mxu0 %v632
    %744 = vmatprep.subr.mxu0 0.0
    %745 = vmatpush1.msra.mxu0 %v633
    %746 = vmatprep.subr.mxu0 0.0
    %747 = vmatpush1.msra.mxu0 %v634
    %748 = vmatprep.subr.mxu0 0.0
    %749 = vmatpush1.msra.mxu0 %v635
    %750 = vmatprep.subr.mxu0 0.0
    %751 = vmatpush1.msra.mxu0 %v636
    %752 = vmatprep.subr.mxu0 0.0
    %753 = vmatpush1.msra.mxu0 %v637
    %754 = vmatprep.subr.mxu0 0.0
    %755 = vmatpush1.msra.mxu0 %v638
    %756 = vmatprep.subr.mxu0 0.0
    %757 = vmatpush1.msra.mxu0 %v639
    %758 = vmatprep.subr.mxu0 0.0
    %759 = vmatpush1.msra.mxu0 %v640
    %760 = vmatprep.subr.mxu0 0.0
    %761 = vmatpush1.msra.mxu0 %v641
    %762 = vmatprep.subr.mxu0 0.0
    %763 = vmatpush1.msra.mxu0 %v642
    %764 = vmatprep.subr.mxu0 0.0
    %765 = vmatpush1.msra.mxu0 %v643
    %766 = vmatprep.subr.mxu0 0.0
    %767 = vmatpush1.msra.mxu0 %v644
    %768 = vmatprep.subr.mxu0 0.0
    %769 = vmatpush1.msra.mxu0 %v645
    %770 = vmatprep.subr.mxu0 0.0
    %771 = vmatpush1.msra.mxu0 %v646
    %772 = vmatprep.subr.mxu0 0.0
    %773 = vmatpush1.msra.mxu0 %v647
    %774 = vmatprep.subr.mxu0 0.0
    %775 = vmatpush1.msra.mxu0 %v648
    %776 = vmatprep.subr.mxu0 0.0
    %777 = vmatpush1.msra.mxu0 %v649
    %778 = vmatprep.subr.mxu0 0.0
    %779 = vmatpush1.msra.mxu0 %v650
    %780 = vmatprep.subr.mxu0 0.0
    %781 = vmatpush1.msra.mxu0 %v651
    %782 = vmatprep.subr.mxu0 0.0
    %783 = vmatpush1.msra.mxu0 %v652
    %784 = vmatprep.subr.mxu0 0.0
    %785 = vmatpush1.msra.mxu0 %v653
    %786 = vmatprep.subr.mxu0 0.0
    %787 = vmatpush1.msra.mxu0 %v654
    %788 = vmatprep.subr.mxu0 0.0
    %789 = vmatpush1.msra.mxu0 %v655
    %790 = vmatprep.mubr.f32.mxu0 %v591
    %791 = vmatmul.mubr.f32.gmra.mrb[0].mxu0 %v590
    %v792 = vpop.f32.mrb[0].mxu0
    %v793 = vadd.f32 %v723, %v792
    %v794 = vpop.f32.mrb[0].mxu0
    %795 = vdwg.mxu0
    %v796 = vmul.f32 %v793, %v236
    %v797 = vld [vmem:[%s6] sm:$0x1]
    %v799 = vlaneseq
    %v800 = vshrl.u32 %v799, 7
    %v801 = vsub.s32 0, %v800
    %v802 = vrot.slane %v797, %v801
    %v804 = vadd.f32 %v796, %v802
    %805 = vst [vmem:[#allocation7] sm:$0xff] %v804
    // Predicated region
    $region38: #{tpu_custom_call.1} parent=1 // pred_check
      _
    $region39: #{tpu_custom_call.1} parent=1 // pred_check_branch
      %807 = sbr.rel (0) target = $region41
    $region40: #{tpu_custom_call.1} parent=1 // pred_region
      %s809 = ssub.s32 128, 128
      %810 = vsyncadd [#allocation4], %s809
      %s812 = sshll.u32 [#allocation7], 4
      %s813 = int_to_ptr.vmem [resolvable:$true] %s812
      %815 = dma.vmem_to_hbm [thread:$0]  %s813, 128, %s7, [#allocation4]
    $region41: #{tpu_custom_call.1} parent=1 // pred_fallthru
      _
    // Predicated region
    $region42: #{tpu_custom_call.1} parent=1 // pred_check
      _
    $region43: #{tpu_custom_call.1} parent=1 // pred_check_branch
      %817 = sbr.rel (0) target = $region45
    $region44: #{tpu_custom_call.1} parent=1 // pred_region
      %818 = dma.done [#allocation4], 128
    $region45: #{tpu_custom_call.1} parent=1 // pred_fallthru
      _
    %819 = vsyncpa [#allocation3], 1
    %820 = vsyncpa [#allocation6], 1
    %821 = vsyncpa [#allocation4], 1

</llo_original>
